<compile_context>
chip_gen: v6e
topology: v6e:2x2x1
jax: 0.10.0
libtpu: 0.0.40
codegen_flags: <defaults>
</compile_context>

<pallas_src>
import functools

import jax
import jax.numpy as jnp
from jax import lax
from jax.experimental import pallas as pl
from jax.experimental.pallas import tpu as pltpu

LN_EPS = 1e-5  # PyTorch nn.LayerNorm default


def _round_up(n, m):
    return ((n + m - 1) // m) * m


def _vmem_capacity_bytes():
    """Best-effort per-core VMEM capacity; conservative (v7x-sized) fallback."""
    try:
        return int(pltpu.get_tpu_info().vmem_capacity_bytes)
    except Exception:
        return 64 * 1024 * 1024


def _const_block_spec(shape):
    """Constant-index parameter block: single-buffer it (the index_map never
    changes, so a second pipeline buffer is pure VMEM waste)."""
    try:
        return pl.BlockSpec(shape, lambda i: (0, 0), pipeline_mode=pl.Buffered(1))
    except Exception:
        # Older API without pipeline_mode: fall back to the default (2 buffers).
        return pl.BlockSpec(shape, lambda i: (0, 0))


def _spt_kernel(x_ref, w_ref, bias_ref, o_ref, *, inv_patch_dim):
    # x_ref:    (tm, Kp)     token rows, (c p1 p2) feature order, zero-padded K
    # w_ref:    (Kp, dim_p)  folded Linear weight (gamma folded in, compute dtype)
    # bias_ref: (1, dim_p)   folded bias (beta folded in), f32
    # o_ref:    (tm, dim_p)
    x = x_ref[...].astype(jnp.float32)

    # One-pass LayerNorm stats (f32). Zero-padded K columns contribute nothing to
    # the sums; divide by the true patch_dim.
    s1 = jnp.sum(x, axis=-1, keepdims=True)
    s2 = jnp.sum(x * x, axis=-1, keepdims=True)
    mean = s1 * inv_patch_dim
    var = jnp.maximum(s2 * inv_patch_dim - mean * mean, 0.0)
    inv = lax.rsqrt(var + LN_EPS)

    # Padded columns become (0 - mean) * inv, but they only hit zero weight rows.
    xn = ((x - mean) * inv).astype(w_ref.dtype)

    # MXU matmul in the weight's dtype (bf16), f32 accumulation.
    y = jnp.dot(xn, w_ref[...], preferred_element_type=jnp.float32)
    o_ref[...] = (y + bias_ref[...]).astype(o_ref.dtype)


def _pick_tm(M, Kp, dim_p, x_bytes, w_bytes, out_bytes, cd_bytes,
             vmem_budget, tm_max, min_steps=4):
    """Largest row tile (multiple of 8) under a VMEM budget, capped so the grid
    has >= min_steps steps, preferring a tile that divides M exactly."""
    fixed = Kp * dim_p * w_bytes + dim_p * 4            # single-buffered params
    per_row = (2 * Kp * x_bytes                          # 2x token tile (pipeline)
               + 2 * dim_p * out_bytes                   # 2x output tile
               + Kp * 4                                  # f32 x temp
               + Kp * cd_bytes                           # compute-dtype xn copy
               + dim_p * 4)                              # f32 matmul accumulator
    cap = (vmem_budget - fixed) // max(per_row, 1)
    cap = max(8, min(int(cap), tm_max))
    # Keep >= min_steps grid steps: lets v7x's two TensorCores both get work and
    # gives the pipeline a steady state.
    cap = min(cap, _round_up(max((M + min_steps - 1) // min_steps, 1), 8))
    cap = max(8, (cap // 8) * 8)
    # Prefer an exact divisor of M so the host-side token pad is a no-op.
    for t in range(cap, 7, -8):
        if M % t == 0:
            return t
    return cap


def prepare_spt_params(gamma, beta, weight, bias, *, patch_size, channels,
                       compute_dtype=jnp.bfloat16):
    """One-time parameter prep (call once, outside the per-call/jitted path).

    weight: (patch_dim, dim) == torch Linear weight.T; gamma/beta: (patch_dim,).
    Folds the (p1 p2 c)->(c p1 p2) permutation and the LayerNorm affine into the
    Linear weight/bias (in f32), pads K and N to multiples of 128, and casts the
    weight to the MXU compute dtype.
    """
    p, C = patch_size, channels
    patch_dim, dim = weight.shape
    assert patch_dim == p * p * C

    # (p1 p2 c) -> (c p1 p2) feature permutation (LN stats are perm-invariant).
    perm = jnp.arange(patch_dim).reshape(p, p, C).transpose(2, 0, 1).reshape(-1)
    w32 = weight.astype(jnp.float32)[perm, :]
    g32 = gamma.astype(jnp.float32)[perm]
    b32 = beta.astype(jnp.float32)[perm]

    # Fold LN affine:  (xhat*g + b) @ W + bias == xhat @ (g[:,None]*W) + (b@W + bias)
    w_fold = g32[:, None] * w32                       # fold in f32, cast after
    bias_fold = bias.astype(jnp.float32) + b32 @ w32

    # Lane-dense K and N: zero-pad to multiples of 128.
    Kp = _round_up(patch_dim, 128)
    dim_p = _round_up(dim, 128)
    w_fold = jnp.pad(w_fold, ((0, Kp - patch_dim), (0, dim_p - dim)))
    bias_fold = jnp.pad(bias_fold, (0, dim_p - dim)).reshape(1, dim_p)

    return {
        "w": w_fold.astype(compute_dtype),
        "bias": bias_fold,                 # kept f32 (added after the matmul)
        "patch_dim": patch_dim,
        "dim": dim,
        "patch_size": p,
        "channels": C,
    }


def spt_forward(x, params, *, tm=None):
    """x: (B, C, H, W). params: from prepare_spt_params. Returns (B, h*w, dim)."""
    p = params["patch_size"]
    C = params["channels"]
    patch_dim = params["patch_dim"]
    dim = params["dim"]
    w_fold = params["w"]
    bias_fold = params["bias"]
    Kp, dim_p = w_fold.shape

    B, Cx, H, W = x.shape
    assert Cx == C
    h, w = H // p, W // p
    M = B * h * w

    # Host-side patchify with the contiguity-preserving (c p1 p2) ordering
    # (innermost W/p2 axis stays minormost -> a single cheap XLA copy).
    xr = x.reshape(B, C, h, p, w, p)
    xr = jnp.transpose(xr, (0, 2, 4, 1, 3, 5))            # b h w c p1 p2
    tokens = xr.reshape(M, patch_dim)
    if Kp != patch_dim:
        tokens = jnp.pad(tokens, ((0, 0), (0, Kp - patch_dim)))

    # Per-chip VMEM policy.
    vmem_cap = _vmem_capacity_bytes()
    if vmem_cap >= 100 * 1024 * 1024:      # v5e / v6e: 128 MiB physical VMEM
        budget, limit, tm_max = 48 << 20, 64 << 20, 1024
    else:                                   # v7x: 64 MiB per-core VMEM
        budget, limit, tm_max = 20 << 20, 48 << 20, 512

    x_bytes = jnp.dtype(tokens.dtype).itemsize
    w_bytes = jnp.dtype(w_fold.dtype).itemsize
    out_bytes = jnp.dtype(x.dtype).itemsize
    if tm is None:
        tm = _pick_tm(M, Kp, dim_p, x_bytes, w_bytes, out_bytes, w_bytes,
                      vmem_budget=budget, tm_max=tm_max)
    n_steps = -(-M // tm)
    M_pad = n_steps * tm
    if M_pad != M:
        tokens = jnp.pad(tokens, ((0, M_pad - M), (0, 0)))

    kernel = functools.partial(_spt_kernel, inv_patch_dim=1.0 / float(patch_dim))

    cost = pl.CostEstimate(
        flops=2 * M_pad * Kp * dim_p,
        transcendentals=M_pad,
        bytes_accessed=(M_pad * Kp * x_bytes + Kp * dim_p * w_bytes
                        + dim_p * 4 + M_pad * dim_p * out_bytes),
    )

    out = pl.pallas_call(
        kernel,
        out_shape=jax.ShapeDtypeStruct((M_pad, dim_p), x.dtype),
        grid_spec=pltpu.PrefetchScalarGridSpec(
            num_scalar_prefetch=0,
            grid=(n_steps,),
            in_specs=[
                pl.BlockSpec((tm, Kp), lambda i: (i, 0)),
                _const_block_spec((Kp, dim_p)),
                _const_block_spec((1, dim_p)),
            ],
            out_specs=pl.BlockSpec((tm, dim_p), lambda i: (i, 0)),
        ),
        compiler_params=pltpu.CompilerParams(
            dimension_semantics=("parallel",),
            vmem_limit_bytes=limit,
        ),
        cost_estimate=cost,
    )(tokens, w_fold, bias_fold)

    return out[:M, :dim].reshape(B, h * w, dim)


def reference_forward(x, gamma, beta, weight, bias, *, patch_size):
    """Pure-f32 JAX reference mirroring the PyTorch module (original ordering)."""
    B, C, H, W = x.shape
    p = patch_size
    h, w = H // p, W // p
    xr = x.reshape(B, C, h, p, w, p)
    xr = jnp.transpose(xr, (0, 2, 4, 3, 5, 1)).reshape(B, h * w, p * p * C)
    xf = xr.astype(jnp.float32)
    mean = jnp.mean(xf, axis=-1, keepdims=True)
    var = jnp.mean((xf - mean) ** 2, axis=-1, keepdims=True)
    xn = (xf - mean) * lax.rsqrt(var + LN_EPS) * gamma + beta
    return (xn @ weight + bias).astype(x.dtype)


if __name__ == "__main__":
    # Small shapes consistent with the module:
    #   batch=2, channels=4, spatial=16, patch_size=4 -> 16 patches, patch_dim=64
    B, C, HW = 2, 4, 16
    patch_size = 4
    dim = 32
    patch_dim = patch_size * patch_size * C

    key = jax.random.PRNGKey(0)
    kx, kw, kb, kg, kbe = jax.random.split(key, 5)

    x = jax.random.normal(kx, (B, C, HW, HW), dtype=jnp.float32)
    # Linear weight stored as (patch_dim, dim) == torch weight.T
    weight = jax.random.normal(kw, (patch_dim, dim), dtype=jnp.float32) * (patch_dim ** -0.5)
    bias = jax.random.normal(kb, (dim,), dtype=jnp.float32) * 0.01
    # Non-trivial LN affine so the gamma/beta folding path is exercised.
    gamma = 1.0 + 0.1 * jax.random.normal(kg, (patch_dim,), dtype=jnp.float32)
    beta = 0.1 * jax.random.normal(kbe, (patch_dim,), dtype=jnp.float32)

    # One-time param prep (perm fold + LN-affine fold + pad + bf16 cast), hoisted
    # out of the per-call / jitted path.
    params = prepare_spt_params(gamma, beta, weight, bias,
                                patch_size=patch_size, channels=C)

    fwd = jax.jit(lambda xx: spt_forward(xx, params))
    out = jax.block_until_ready(fwd(x))

    ref = reference_forward(x, gamma, beta, weight, bias, patch_size=patch_size)
    assert out.shape == (B, (HW // patch_size) ** 2, dim)
    # bf16 MXU operands (f32 accumulation) drift slightly from the pure-f32
    # reference; a permutation/fold/indexing bug would produce O(1) errors.
    assert jnp.allclose(out, ref, atol=3e-2, rtol=3e-2), "mismatch vs reference"

    print("KERNEL_OK")
</pallas_src>

<mosaic_0001>
module attributes {stable_mosaic.version = 11 : i64} {
  func.func @_spt_kernel(%arg0: i32, %arg1: memref<8x128xf32, #tpu.memory_space<vmem>>, %arg2: memref<128x128xbf16, #tpu.memory_space<vmem>>, %arg3: memref<1x128xf32, #tpu.memory_space<vmem>>, %arg4: memref<8x128xf32, #tpu.memory_space<vmem>>) attributes {dimension_semantics = [#tpu.dimension_semantics<parallel>], iteration_bounds = array<i64: 4>, scalar_prefetch = 0 : i64, scratch_operands = 0 : i64, tpu.core_type = #tpu.core_type<tc>, window_params = [{transform_indices = @transform_0, window_bounds = array<i64: 8, 128>}, {pipeline_mode = #tpu.pipeline_mode<synchronous>, transform_indices = @transform_1, window_bounds = array<i64: 128, 128>}, {pipeline_mode = #tpu.pipeline_mode<synchronous>, transform_indices = @transform_2, window_bounds = array<i64: 1, 128>}, {transform_indices = @transform_3, window_bounds = array<i64: 8, 128>}]} {
    %c0 = arith.constant 0 : index
    %c0_0 = arith.constant 0 : index
    %0 = vector.load %arg1[%c0, %c0_0] : memref<8x128xf32, #tpu.memory_space<vmem>>, vector<8x128xf32>
    %cst = arith.constant dense<0.000000e+00> : vector<8xf32>
    %1 = vector.multi_reduction <add>, %0, %cst [1] : vector<8x128xf32> to vector<8xf32>
    %2 = vector.shape_cast %1 : vector<8xf32> to vector<8x1xf32>
    %3 = arith.mulf %0, %0 : vector<8x128xf32>
    %cst_1 = arith.constant dense<0.000000e+00> : vector<8xf32>
    %4 = vector.multi_reduction <add>, %3, %cst_1 [1] : vector<8x128xf32> to vector<8xf32>
    %5 = vector.shape_cast %4 : vector<8xf32> to vector<8x1xf32>
    %cst_2 = arith.constant 1.562500e-02 : f32
    %6 = vector.broadcast %cst_2 : f32 to vector<8x1xf32>
    %7 = arith.mulf %2, %6 : vector<8x1xf32>
    %cst_3 = arith.constant 1.562500e-02 : f32
    %8 = vector.broadcast %cst_3 : f32 to vector<8x1xf32>
    %9 = arith.mulf %5, %8 : vector<8x1xf32>
    %10 = arith.mulf %7, %7 : vector<8x1xf32>
    %11 = arith.subf %9, %10 : vector<8x1xf32>
    %cst_4 = arith.constant 0.000000e+00 : f32
    %12 = vector.broadcast %cst_4 : f32 to vector<8x1xf32>
    %13 = arith.maximumf %11, %12 : vector<8x1xf32>
    %cst_5 = arith.constant 9.99999974E-6 : f32
    %14 = vector.broadcast %cst_5 : f32 to vector<8x1xf32>
    %15 = arith.addf %13, %14 : vector<8x1xf32>
    %16 = math.rsqrt %15 : vector<8x1xf32>
    %17 = vector.broadcast %7 : vector<8x1xf32> to vector<8x128xf32>
    %18 = arith.subf %0, %17 : vector<8x128xf32>
    %19 = vector.broadcast %16 : vector<8x1xf32> to vector<8x128xf32>
    %20 = arith.mulf %18, %19 : vector<8x128xf32>
    %21 = arith.truncf %20 : vector<8x128xf32> to vector<8x128xbf16>
    %c0_6 = arith.constant 0 : index
    %c0_7 = arith.constant 0 : index
    %22 = vector.load %arg2[%c0_6, %c0_7] : memref<128x128xbf16, #tpu.memory_space<vmem>>, vector<128x128xbf16>
    %cst_8 = arith.constant dense<0.000000e+00> : vector<8x128xf32>
    %23 = tpu.matmul %21, %22, %cst_8 {dimension_numbers = #tpu.dot_dimension_numbers<[1], [0], [0], [1], [0, 0, 1, 1], [], []>} : vector<8x128xbf16>, vector<128x128xbf16>, vector<8x128xf32> -> vector<8x128xf32>
    %c0_9 = arith.constant 0 : index
    %c0_10 = arith.constant 0 : index
    %24 = vector.load %arg3[%c0_9, %c0_10] : memref<1x128xf32, #tpu.memory_space<vmem>>, vector<1x128xf32>
    %25 = vector.broadcast %24 : vector<1x128xf32> to vector<8x128xf32>
    %26 = arith.addf %23, %25 : vector<8x128xf32>
    %c0_11 = arith.constant 0 : index
    %c0_12 = arith.constant 0 : index
    %27 = vector.load %arg4[%c0_11, %c0_12] : memref<8x128xf32, #tpu.memory_space<vmem>>, vector<8x128xf32>
    tpu.vector_store %arg4[%c0_11, %c0_12], %26 {strides = array<i32>} : memref<8x128xf32, #tpu.memory_space<vmem>>, vector<8x128xf32>,
    return
  }
  func.func @transform_0(%arg0: i32) -> (i32, i32) {
    %c0_i32 = arith.constant 0 : i32
    %c0_i32_0 = arith.constant 0 : i32
    return %arg0, %c0_i32 : i32, i32
  }
  func.func @transform_1(%arg0: i32) -> (i32, i32) {
    %c0_i32 = arith.constant 0 : i32
    %c0_i32_0 = arith.constant 0 : i32
    %c0_i32_1 = arith.constant 0 : i32
    return %c0_i32, %c0_i32_0 : i32, i32
  }
  func.func @transform_2(%arg0: i32) -> (i32, i32) {
    %c0_i32 = arith.constant 0 : i32
    %c0_i32_0 = arith.constant 0 : i32
    %c0_i32_1 = arith.constant 0 : i32
    return %c0_i32, %c0_i32_0 : i32, i32
  }
  func.func @transform_3(%arg0: i32) -> (i32, i32) {
    %c0_i32 = arith.constant 0 : i32
    %c0_i32_0 = arith.constant 0 : i32
    return %arg0, %c0_i32 : i32, i32
  }
}

</mosaic_0001>

<llo_original>
// kernel: _lambda_.1
$region0: #{_lambda_.1}
  #allocation0 [shape = 'u32[]', space=smem, size = 0x4, offset = 0x4, fixed_abs, tag = 'smem constant byte address 0x4 - core index']
  #allocation1 [shape = 'u32[144,128]{1,0:T(1,128)}', space=vmem, size = 0x12000, scoped, tag = 'internal scratch']
  %s0 = inlined_call_operand.vmem [shape: f32[32,128], index: 0, kind: input, shape index: {}]
  %s1 = inlined_call_operand.vmem [shape: bf16[128,128], index: 1, kind: input, shape index: {}]
  %s2 = inlined_call_operand.vmem [shape: f32[1,128], index: 2, kind: input, shape index: {}]
  %s3 = inlined_call_operand.hbm [shape: f32[32,128], index: 3, kind: output, shape index: {}]
  %s4 = sld [smem:[#allocation0]]
  $region45: #{_lambda_.1} parent=0
    _
  %s6 = ssub.s32 1, %s4
  %s7 = scalar_select 0, %s6, %s4
  $region1: #{_lambda_.1} parent=0
    #allocation2 [shape = 'u8[8192]{0}', space=vmem, size = 0x2000, scoped, tag = 'output window, operand 0']
    #allocation3 [shape = 's32[2]{0}', space=sflag, size = 0x8, scoped, tag = 'scoped memory for _lambda_.1']
    %8 = vsyncpa [#allocation3], 0
    %s9 = scalar_lea.sflag [#allocation3], 1
    %10 = vsyncpa %s9, 0
    loop: start=0, step=1, limit=6
    $region2: #{_lambda_.1} parent=1 // loop_pre_header
      _
    $region3: #{_lambda_.1} parent=1 // loop_header
      %s12 = sphi 0, %s16
      %p13 = scmp.ge.s32.totalorder %s12, 6
      %s22 = sphi 0, %s24
      %s25 = sphi 0, %s22
      %s26 = sphi 0, %s25
      %s42 = sphi 0, %s26
      %s46 = sphi 0, %s46
      %s48 = sphi 0, %s46
      %s49 = sphi 0, %s48
      %s63 = sphi 0, %s49
      %s67 = sphi 0, %s67
      %s69 = sphi 0, %s67
      %s70 = sphi 0, %s69
      %s84 = sphi 0, %s70
      %s90 = sphi 0, %s92
      %s93 = sphi 0, %s90
      %s94 = sphi 0, %s93
      %s110 = sphi 0, %s94
    $region4: #{_lambda_.1} parent=1 // loop_header_branch
      %15 = sbr.rel (%p13) target = $region8
    $region5: #{_lambda_.1} parent=1 // loop_body
      %s17 = ssub.s32 %s12, 1
      %s18 = ssub.s32 %s12, 2
      %s19 = sadd.s32 %s12, 1
      %s20 = ssub.s32 %s12, %s19
      %p21 = scmp.eq.s32.totalorder %s20, 0
      %s23 = sadd.s32 %s22, 1
      %s24 = scalar_select %p21, %s22, %s23
      %p27 = pneg %p21
      %p28 = scmp.eq.s32.totalorder %s12, 3
      %p29 = por %p27, %p28
      %p30 = scmp.ne.s32.totalorder %s22, %s25
      %p31 = scmp.eq.s32.totalorder %s12, 0
      %p32 = por %p30, %p31
      %p33 = scmp.ne.s32.totalorder %s22, %s25
      %p34 = scmp.eq.s32.totalorder %s17, 3
      %p35 = por %p33, %p34
      %p36 = scmp.ne.s32.totalorder %s25, %s26
      %p37 = scmp.eq.s32.totalorder %s17, 0
      %p38 = por %p36, %p37
      %p39 = scmp.ne.s32.totalorder %s25, %s26
      %p40 = scmp.eq.s32.totalorder %s18, 3
      %p41 = por %p39, %p40
      %p43 = scmp.ne.s32.totalorder %s26, %s42
      %p44 = scmp.eq.s32.totalorder %s18, 0
      %p45 = por %p43, %p44
      %s47 = sadd.s32 %s46, 1
      %p50 = scmp.eq.s32.totalorder %s12, 3
      %p51 = scmp.ne.s32.totalorder %s46, %s48
      %p52 = scmp.eq.s32.totalorder %s12, 0
      %p53 = por %p51, %p52
      %p54 = scmp.ne.s32.totalorder %s46, %s48
      %p55 = scmp.eq.s32.totalorder %s17, 3
      %p56 = por %p54, %p55
      %p57 = scmp.ne.s32.totalorder %s48, %s49
      %p58 = scmp.eq.s32.totalorder %s17, 0
      %p59 = por %p57, %p58
      %p60 = scmp.ne.s32.totalorder %s48, %s49
      %p61 = scmp.eq.s32.totalorder %s18, 3
      %p62 = por %p60, %p61
      %p64 = scmp.ne.s32.totalorder %s49, %s63
      %p65 = scmp.eq.s32.totalorder %s18, 0
      %p66 = por %p64, %p65
      %s68 = sadd.s32 %s67, 1
      %p71 = scmp.eq.s32.totalorder %s12, 3
      %p72 = scmp.ne.s32.totalorder %s67, %s69
      %p73 = scmp.eq.s32.totalorder %s12, 0
      %p74 = por %p72, %p73
      %p75 = scmp.ne.s32.totalorder %s67, %s69
      %p76 = scmp.eq.s32.totalorder %s17, 3
      %p77 = por %p75, %p76
      %p78 = scmp.ne.s32.totalorder %s69, %s70
      %p79 = scmp.eq.s32.totalorder %s17, 0
      %p80 = por %p78, %p79
      %p81 = scmp.ne.s32.totalorder %s69, %s70
      %p82 = scmp.eq.s32.totalorder %s18, 3
      %p83 = por %p81, %p82
      %p85 = scmp.ne.s32.totalorder %s70, %s84
      %p86 = scmp.eq.s32.totalorder %s18, 0
      %p87 = por %p85, %p86
      %s88 = ssub.s32 %s12, %s19
      %p89 = scmp.eq.s32.totalorder %s88, 0
      %s91 = sadd.s32 %s90, 1
      %s92 = scalar_select %p89, %s90, %s91
      %p95 = pneg %p89
      %p96 = scmp.eq.s32.totalorder %s12, 3
      %p97 = por %p95, %p96
      %p98 = scmp.ne.s32.totalorder %s90, %s93
      %p99 = scmp.eq.s32.totalorder %s12, 0
      %p100 = por %p98, %p99
      %p101 = scmp.ne.s32.totalorder %s90, %s93
      %p102 = scmp.eq.s32.totalorder %s17, 3
      %p103 = por %p101, %p102
      %p104 = scmp.ne.s32.totalorder %s93, %s94
      %p105 = scmp.eq.s32.totalorder %s17, 0
      %p106 = por %p104, %p105
      %p107 = scmp.ne.s32.totalorder %s93, %s94
      %p108 = scmp.eq.s32.totalorder %s18, 3
      %p109 = por %p107, %p108
      %p111 = scmp.ne.s32.totalorder %s94, %s110
      %p112 = scmp.eq.s32.totalorder %s18, 0
      %p113 = por %p111, %p112
      %p114 = scmp.le.s32.totalorder 1, %s12
      %p115 = scmp.lt.s32.totalorder %s12, 5
      %p116 = pnand %p114, %p115
      %p117 = pneg %p116
      // Predicated region
      $region9: #{_lambda_.1} parent=5 // pred_check
        _
      $region10: #{_lambda_.1} parent=5 // pred_check_branch
        %119 = sbr.rel (%p116) target = $region12
      $region11: #{_lambda_.1} parent=5 // pred_region
        %s120 = ssub.s32 %s12, 1
        // Predicated region
        $region13: #{_lambda_.1} parent=11 // pred_check
          %p121 = pneg %p59
        $region14: #{_lambda_.1} parent=11 // pred_check_branch
          %123 = sbr.rel (%p121) target = $region16
        $region15: #{_lambda_.1} parent=11 // pred_region
          _
        $region16: #{_lambda_.1} parent=11 // pred_fallthru
          _
        // Predicated region
        $region17: #{_lambda_.1} parent=11 // pred_check
          %p124 = pneg %p80
        $region18: #{_lambda_.1} parent=11 // pred_check_branch
          %126 = sbr.rel (%p124) target = $region20
        $region19: #{_lambda_.1} parent=11 // pred_region
          _
        $region20: #{_lambda_.1} parent=11 // pred_fallthru
          _
      $region12: #{_lambda_.1} parent=5 // pred_fallthru
        _
      %p127 = scmp.lt.s32.totalorder %s12, 4
      // Predicated region
      $region21: #{_lambda_.1} parent=5 // pred_check
        %p128 = pneg %p127
      $region22: #{_lambda_.1} parent=5 // pred_check_branch
        %130 = sbr.rel (%p128) target = $region24
      $region23: #{_lambda_.1} parent=5 // pred_region
        // Predicated region
        $region25: #{_lambda_.1} parent=23 // pred_check
          %p131 = pneg %p32
        $region26: #{_lambda_.1} parent=23 // pred_check_branch
          %133 = sbr.rel (%p131) target = $region28
        $region27: #{_lambda_.1} parent=23 // pred_region
          %p134 = scmp.lt.s32.totalorder %s12, 3
          %s135 = scalar_select %p134, %s12, 3
          %s136 = smul.addr %s135, 8
          %s137 = scalar_lea.vmem %s0, %s136
        $region28: #{_lambda_.1} parent=23 // pred_fallthru
          _
      $region24: #{_lambda_.1} parent=5 // pred_fallthru
        _
      %p138 = scmp.le.s32.totalorder 1, %s12
      %p139 = scmp.lt.s32.totalorder %s12, 5
      %p140 = pnand %p138, %p139
      %p141 = pneg %p140
      // Predicated region
      $region29: #{_lambda_.1} parent=5 // pred_check
        _
      $region30: #{_lambda_.1} parent=5 // pred_check_branch
        %143 = sbr.rel (%p140) target = $region32
      $region31: #{_lambda_.1} parent=5 // pred_region
        %s144 = ssub.s32 %s12, 1
        %p145 = scmp.lt.s32.totalorder %s17, 3
        %s146 = scalar_select %p145, %s17, 3
        %s147 = smul.addr %s146, 8
        %s148 = scalar_lea.vmem %s0, %s147
        %p149 = pneg %p38
        %p150 = pneg %p35
        %p151 = pneg %p59
        %p152 = pneg %p56
        %p153 = pneg %p80
        %p154 = pneg %p77
        %p155 = pneg %p106
        %p156 = pneg %p103
        %s157 = sand.u32 %s93, 1
        %s158 = scalar_lea.sflag [#allocation3], %s157
        %s159 = sand.u32 %s93, 1
        %s160 = smul.addr %s159, 8
        %s161 = scalar_lea.vmem [#allocation2], %s160
        %p162 = scmp.lt.s32.totalorder %s17, 3
        %s163 = scalar_select %p162, %s17, 3
        %s164 = smul.addr %s163, 8
        %s165 = scalar_lea.vmem %s0, %s164
        %v167 = vld [vmem:[%s165] sm:$0xff]
        %168 = vadd.xlane.f32.xlu0 %v167
        %v169 = vpop.xlane.xlu0 %168
        %v170 = vmul.f32 %v167, %v167
        %171 = vadd.xlane.f32.xlu0 %v170
        %v172 = vpop.xlane.xlu0 %171
        %v173 = vmul.f32 %v169, 0.015625
        %v174 = vmul.f32 %v172, 0.015625
        %v175 = vmul.f32 %v173, %v173
        %v176 = vsub.f32 %v174, %v175
        %v177 = vmax.f32 %v176, 0.0
        %v178 = vadd.f32 %v177, 1e-05
        %v179 = vrsqrt.pop %v178
        %v180 = vsub.f32 %v167, %v173
        %v181 = vmul.f32 %v180, %v179
        %v182 = vpack.c.bf16 %v181, %v181
        %v183 = vld [vmem:[%s1] sm:$0xf]
        %v184 = vld [vmem:[%s1 + $0x4] sm:$0xf]
        %v185 = vld [vmem:[%s1 + $0x8] sm:$0xf]
        %v186 = vld [vmem:[%s1 + $0xc] sm:$0xf]
        %v187 = vld [vmem:[%s1 + $0x10] sm:$0xf]
        %v188 = vld [vmem:[%s1 + $0x14] sm:$0xf]
        %v189 = vld [vmem:[%s1 + $0x18] sm:$0xf]
        %v190 = vld [vmem:[%s1 + $0x1c] sm:$0xf]
        %v191 = vld [vmem:[%s1 + $0x20] sm:$0xf]
        %v192 = vld [vmem:[%s1 + $0x24] sm:$0xf]
        %v193 = vld [vmem:[%s1 + $0x28] sm:$0xf]
        %v194 = vld [vmem:[%s1 + $0x2c] sm:$0xf]
        %v195 = vld [vmem:[%s1 + $0x30] sm:$0xf]
        %v196 = vld [vmem:[%s1 + $0x34] sm:$0xf]
        %v197 = vld [vmem:[%s1 + $0x38] sm:$0xf]
        %v198 = vld [vmem:[%s1 + $0x3c] sm:$0xf]
        %v199 = vld [vmem:[%s2] sm:$0x1]
        %v201 = vlaneseq
        %v202 = vshrl.u32 %v201, 7
        %v203 = vsub.s32 0, %v202
        %v204 = vrot.slane %v199, %v203
        %v222 = vunpack.c.l.b16 %v183
        %v223 = vunpack.c.l.b16 %v184
        %v224 = vunpack.c.l.b16 %v185
        %v225 = vunpack.c.l.b16 %v186
        %v226 = vunpack.c.l.b16 %v187
        %v227 = vunpack.c.l.b16 %v188
        %v228 = vunpack.c.l.b16 %v189
        %v229 = vunpack.c.l.b16 %v190
        %v230 = vunpack.c.l.b16 %v191
        %v231 = vunpack.c.l.b16 %v192
        %v232 = vunpack.c.l.b16 %v193
        %v233 = vunpack.c.l.b16 %v194
        %v234 = vunpack.c.l.b16 %v195
        %v235 = vunpack.c.l.b16 %v196
        %v236 = vunpack.c.l.b16 %v197
        %v237 = vunpack.c.l.b16 %v198
        %v238 = vpack.c.b16 %v223, %v222
        %v239 = vpack.c.b16 %v225, %v224
        %v240 = vpack.c.b16 %v227, %v226
        %v241 = vpack.c.b16 %v229, %v228
        %v242 = vpack.c.b16 %v231, %v230
        %v243 = vpack.c.b16 %v233, %v232
        %v244 = vpack.c.b16 %v235, %v234
        %v245 = vpack.c.b16 %v237, %v236
        %254 = vmatprep.subr.bf16.mxu0 0
        %255 = vmatpush1.bf16.msra.mxu0 %v245
        %256 = vmatprep.subr.bf16.mxu0 0
        %257 = vmatpush1.bf16.msra.mxu0 %v244
        %258 = vmatprep.subr.bf16.mxu0 0
        %259 = vmatpush1.bf16.msra.mxu0 %v243
        %260 = vmatprep.subr.bf16.mxu0 0
        %261 = vmatpush1.bf16.msra.mxu0 %v242
        %262 = vmatprep.subr.bf16.mxu0 0
        %263 = vmatpush1.bf16.msra.mxu0 %v241
        %264 = vmatprep.subr.bf16.mxu0 0
        %265 = vmatpush1.bf16.msra.mxu0 %v240
        %266 = vmatprep.subr.bf16.mxu0 0
        %267 = vmatpush1.bf16.msra.mxu0 %v239
        %268 = vmatprep.subr.bf16.mxu0 0
        %269 = vmatpush1.bf16.msra.mxu0 %v238
        %270 = vmatprep.subr.bf16.mxu0 0
        %271 = vmatpush2.bf16.msra.mxu0 0
        %272 = vmatprep.subr.bf16.mxu0 0
        %273 = vmatpush2.bf16.msra.mxu0 0
        %274 = vmatprep.subr.bf16.mxu0 0
        %275 = vmatpush2.bf16.msra.mxu0 0
        %276 = vmatprep.subr.bf16.mxu0 0
        %277 = vmatpush2.bf16.msra.mxu0 0
        %278 = vmatprep.subr.bf16.mxu0 0
        %279 = vmatpush2.bf16.msra.mxu0 0
        %280 = vmatprep.subr.bf16.mxu0 0
        %281 = vmatpush2.bf16.msra.mxu0 0
        %282 = vmatprep.subr.bf16.mxu0 0
        %283 = vmatpush2.bf16.msra.mxu0 0
        %284 = vmatprep.subr.bf16.mxu0 0
        %285 = vmatpush2.bf16.msra.mxu0 0
        %286 = vmatprep.mubr.bf16.mxu0 0
        %287 = vmatmul.mubr.bf16.gmra.mxu0 %v182
        %v288 = vpop.f32.mrf.mxu0
        %v289 = vadd.f32 %v204, %v288
        %v290 = vpop.f32.mrf.mxu0
        %v291 = vpop.f32.mrf.mxu0
        %v292 = vpop.f32.mrf.mxu0
        %293 = vdwg.mxu0
        %294 = vst [vmem:[%s161] sm:$0xff] %v289
        %s295 = sand.u32 %s93, 1
        %s296 = scalar_lea.sflag [#allocation3], %s295
        %s297 = sand.u32 %s93, 1
        %s298 = smul.addr %s297, 8
        %s299 = scalar_lea.vmem [#allocation2], %s298
        // Predicated region
        $region33: #{_lambda_.1} parent=31 // pred_check
          %p300 = pneg %p103
        $region34: #{_lambda_.1} parent=31 // pred_check_branch
          %302 = sbr.rel (%p300) target = $region36
        $region35: #{_lambda_.1} parent=31 // pred_region
          %s304 = ssub.s32 128, 128
          %305 = vsyncadd %s296, %s304
          %s306 = smul.addr %s17, 128
          %s307 = scalar_lea.hbm %s3, %s306
          %s309 = sshll.u32 %s299, 4
          %s310 = int_to_ptr.vmem [resolvable:$true] %s309
          %312 = dma.vmem_to_hbm [thread:$0]  %s310, 128, %s307, %s296
        $region36: #{_lambda_.1} parent=31 // pred_fallthru
          _
      $region32: #{_lambda_.1} parent=5 // pred_fallthru
        _
      %p313 = scmp.le.s32.totalorder 2, %s12
      // Predicated region
      $region37: #{_lambda_.1} parent=5 // pred_check
        %p314 = pneg %p313
      $region38: #{_lambda_.1} parent=5 // pred_check_branch
        %316 = sbr.rel (%p314) target = $region40
      $region39: #{_lambda_.1} parent=5 // pred_region
        %s317 = ssub.s32 %s12, 2
        // Predicated region
        $region41: #{_lambda_.1} parent=39 // pred_check
          %p318 = pneg %p109
        $region42: #{_lambda_.1} parent=39 // pred_check_branch
          %320 = sbr.rel (%p318) target = $region44
        $region43: #{_lambda_.1} parent=39 // pred_region
          %s321 = sand.u32 %s94, 1
          %s322 = scalar_lea.sflag [#allocation3], %s321
          %s323 = sand.u32 %s94, 1
          %s324 = smul.addr %s323, 8
          %s325 = scalar_lea.vmem [#allocation2], %s324
          %326 = dma.done %s322, 128
        $region44: #{_lambda_.1} parent=39 // pred_fallthru
          _
      $region40: #{_lambda_.1} parent=5 // pred_fallthru
        _
    $region6: #{_lambda_.1} parent=1 // loop_footer
      %s16 = sadd.s32 1, %s12
    $region7: #{_lambda_.1} parent=1 // loop_footer_branch
      %11 = sbr.rel target = $region3
    $region8: #{_lambda_.1} parent=1 // loop_exit
      _
    %327 = vsyncpa [#allocation3], 1
    %s328 = scalar_lea.sflag [#allocation3], 1
    %329 = vsyncpa %s328, 1

</llo_original>
